<compile_context>
chip_gen: v5e
topology: v5e:2x2
jax: 0.10.0
libtpu: 0.0.40
codegen_flags: <defaults>
</compile_context>

<pallas_src>
import jax
import jax.numpy as jnp
from jax.experimental import pallas as pl
from jax.experimental.pallas import tpu as pltpu

_TARGET_TILE_ELEMS = 512 * 1024  # ~2 MiB of f32 output per grid step
_COL_CANDIDATES = (8192, 4096, 2048, 1024, 512, 256, 128)
_FALLBACK_COLS = 1024


def _make_kernel(inv: float, unsigned_wrap):
    """Kernel factory: scale (and optional unsigned fixup) baked in as
    compile-time constants -- no scalar operand, no extra DMA."""

    def kernel(x_ref, o_ref):
        v = x_ref[...].astype(jnp.float32)
        if unsigned_wrap is not None:
            # Input was an unsigned type reinterpreted as its signed twin;
            # undo the wrap after the float cast (exact for 8/16-bit values).
            v = jnp.where(v < 0.0, v + unsigned_wrap, v)
        o_ref[...] = (v * jnp.float32(inv)).astype(o_ref.dtype)

    return kernel


def _choose_cols(total: int) -> int:
    """Largest lane-dense (multiple-of-128) column count that divides total,
    so the reshape is free and no flat padding is needed."""
    for cols in _COL_CANDIDATES:
        if total % cols == 0:
            return cols
    return _FALLBACK_COLS  # will need padding


def _choose_tile_rows(rows: int, cols: int) -> int:
    """Rows per grid step: full extent if small, otherwise a multiple of 8
    near the VMEM target that (preferably) divides rows to avoid padding."""
    target = max(8, _TARGET_TILE_ELEMS // cols)
    if rows <= target:
        return rows  # single block over rows (full-dim block -> no (8) rule)
    t = (target // 8) * 8
    best_nodiv = t
    while t >= 8:
        if rows % t == 0:
            return t
        t -= 8
    return best_nodiv  # no divisor found; caller pads the row dimension


def int2float(x, bit_depth: int = 8, out_dtype=jnp.float32):
    """Pallas TPU equivalent of Int2Float.forward: x.float() / (2**bit_depth - 1)."""
    orig_shape = x.shape
    inv = 1.0 / (2 ** bit_depth - 1)  # static python constant

    # Unsigned narrow ints: reinterpret as signed (portable Mosaic int->float
    # lowering) and fix the wrap inside the kernel. HBM read stays 1-2 B/elem.
    unsigned_wrap = None
    if x.dtype == jnp.uint8:
        x = jax.lax.bitcast_convert_type(x, jnp.int8)
        unsigned_wrap = 256.0
    elif x.dtype == jnp.uint16:
        x = jax.lax.bitcast_convert_type(x, jnp.int16)
        unsigned_wrap = 65536.0

    total = x.size
    cols = _choose_cols(total)
    rows = -(-total // cols)
    tile_r = _choose_tile_rows(rows, cols)
    rows_padded = -(-rows // tile_r) * tile_r
    padded_total = rows_padded * cols

    x_flat = x.reshape(-1)
    if padded_total != total:
        # Rare fallback (flattened size not a multiple of any lane-dense cols,
        # or rows not divisible by the tile). Padding is a one-off HBM copy.
        x_flat = jnp.pad(x_flat, (0, padded_total - total))
    x2d = x_flat.reshape(rows_padded, cols)

    out2d = pl.pallas_call(
        _make_kernel(inv, unsigned_wrap),
        out_shape=jax.ShapeDtypeStruct((rows_padded, cols), out_dtype),
        grid_spec=pl.GridSpec(
            grid=(rows_padded // tile_r,),
            in_specs=[pl.BlockSpec((tile_r, cols), lambda i: (i, 0))],
            out_specs=pl.BlockSpec((tile_r, cols), lambda i: (i, 0)),
        ),
        compiler_params=pltpu.CompilerParams(
            dimension_semantics=("parallel",),  # v7x: shard rows across 2 TCs
        ),
    )(x2d)

    return out2d.reshape(-1)[:total].reshape(orig_shape)


if __name__ == "__main__":
    key = jax.random.PRNGKey(0)
    # Small NCHW "image batch" of 8-bit values, stored as uint8 (1 B/elem).
    x = jax.random.randint(key, (2, 4, 16, 16), minval=0, maxval=256,
                           dtype=jnp.int32).astype(jnp.uint8)

    y = int2float(x, bit_depth=8)
    jax.block_until_ready(y)

    # Reference check (pure JAX), matching the PyTorch module.
    ref = x.astype(jnp.float32) / (2 ** 8 - 1)
    assert y.dtype == jnp.float32
    assert y.shape == x.shape
    assert jnp.allclose(y, ref, atol=1e-6), "mismatch vs reference"

    print("KERNEL_OK")
</pallas_src>

<mosaic_0001>
module attributes {stable_mosaic.version = 11 : i64} {
  func.func @kernel(%arg0: i32, %arg1: memref<1x2048xi8, #tpu.memory_space<vmem>>, %arg2: memref<1x2048xf32, #tpu.memory_space<vmem>>) attributes {dimension_semantics = [#tpu.dimension_semantics<parallel>], iteration_bounds = array<i64: 1>, scalar_prefetch = 0 : i64, scratch_operands = 0 : i64, tpu.core_type = #tpu.core_type<tc>, window_params = [{transform_indices = @transform_0, window_bounds = array<i64: 1, 2048>}, {transform_indices = @transform_1, window_bounds = array<i64: 1, 2048>}]} {
    %c0 = arith.constant 0 : index
    %c0_0 = arith.constant 0 : index
    %0 = vector.load %arg1[%c0, %c0_0] : memref<1x2048xi8, #tpu.memory_space<vmem>>, vector<1x2048xi8>
    %1 = arith.sitofp %0 : vector<1x2048xi8> to vector<1x2048xf32>
    %cst = arith.constant 0.000000e+00 : f32
    %2 = vector.broadcast %cst : f32 to vector<1x2048xf32>
    %3 = arith.cmpf olt, %1, %2 : vector<1x2048xf32>
    %cst_1 = arith.constant 2.560000e+02 : f32
    %4 = vector.broadcast %cst_1 : f32 to vector<1x2048xf32>
    %5 = arith.addf %1, %4 : vector<1x2048xf32>
    %6 = arith.select %3, %5, %1 : vector<1x2048xi1>, vector<1x2048xf32>
    %cst_2 = arith.constant 0.00392156886 : f32
    %7 = vector.broadcast %cst_2 : f32 to vector<1x2048xf32>
    %8 = arith.mulf %6, %7 : vector<1x2048xf32>
    %c0_3 = arith.constant 0 : index
    %c0_4 = arith.constant 0 : index
    %9 = vector.load %arg2[%c0_3, %c0_4] : memref<1x2048xf32, #tpu.memory_space<vmem>>, vector<1x2048xf32>
    tpu.vector_store %arg2[%c0_3, %c0_4], %8 {strides = array<i32>} : memref<1x2048xf32, #tpu.memory_space<vmem>>, vector<1x2048xf32>,
    return
  }
  func.func @transform_0(%arg0: i32) -> (i32, i32) {
    %c0_i32 = arith.constant 0 : i32
    %c0_i32_0 = arith.constant 0 : i32
    return %arg0, %c0_i32 : i32, i32
  }
  func.func @transform_1(%arg0: i32) -> (i32, i32) {
    %c0_i32 = arith.constant 0 : i32
    %c0_i32_0 = arith.constant 0 : i32
    return %arg0, %c0_i32 : i32, i32
  }
}

</mosaic_0001>

<llo_original>
// kernel: tpu_custom_call.1
$region0: #{tpu_custom_call.1}
  #allocation0 [shape = 'u32[]', space=smem, size = 0x4, offset = 0x4, fixed_abs, tag = 'smem constant byte address 0x4 - core index']
  #allocation1 [shape = 'u32[72,128]{1,0:T(1,128)}', space=vmem, size = 0x9000, scoped, tag = 'internal scratch']
  %s0 = inlined_call_operand.hbm [shape: s8[1,2048], index: 0, kind: input, shape index: {}]
  %s1 = inlined_call_operand.hbm [shape: f32[1,2048], index: 1, kind: output, shape index: {}]
  %s2 = sld [smem:[#allocation0]]
  $region18: #{tpu_custom_call.1} parent=0
    _
  %s4 = ssub.s32 1, %s2
  %s5 = scalar_select 0, %s4, %s2
  $region1: #{tpu_custom_call.1} parent=0
    #allocation2 [shape = 'u8[8192]{0}', space=vmem, size = 0x2000, scoped, tag = 'input window, operand 0, single buffered']
    #allocation3 [shape = 's32[1]{0}', space=sflag, size = 0x4, scoped, tag = 'scoped memory for tpu_custom_call.1']
    #allocation4 [shape = 's32[1]{0}', space=sflag, size = 0x4, scoped, tag = 'scoped memory for tpu_custom_call.1']
    #allocation5 [shape = 'u8[8192]{0}', space=vmem, size = 0x2000, scoped, tag = 'output window, operand 0, single buffered']
    %6 = vsyncpa [#allocation3], 0
    %7 = vsyncpa [#allocation4], 0
    // Predicated region
    $region2: #{tpu_custom_call.1} parent=1 // pred_check
      _
    $region3: #{tpu_custom_call.1} parent=1 // pred_check_branch
      %9 = sbr.rel (0) target = $region5
    $region4: #{tpu_custom_call.1} parent=1 // pred_region
      %11 = vsyncadd [#allocation3], 0
      %s13 = sshll.u32 %s0, 4
      %s14 = int_to_ptr.hbm [resolvable:$true] %s13
      %s15 = sshll.u32 [#allocation2], 4
      %s16 = int_to_ptr.vmem [resolvable:$true] %s15
      %18 = dma.hbm_to_vmem [thread:$0]  %s14, 256, %s16, [#allocation3]
    $region5: #{tpu_custom_call.1} parent=1 // pred_fallthru
      _
    // Predicated region
    $region6: #{tpu_custom_call.1} parent=1 // pred_check
      _
    $region7: #{tpu_custom_call.1} parent=1 // pred_check_branch
      %20 = sbr.rel (0) target = $region9
    $region8: #{tpu_custom_call.1} parent=1 // pred_region
      %22 = dma.done [#allocation3], 256
    $region9: #{tpu_custom_call.1} parent=1 // pred_fallthru
      _
    %v23 = vld [vmem:[#allocation2] sm:$0xff]
    %v24 = vld [vmem:[#allocation2 + $0x8] sm:$0xff]
    %v25 = vunpack.c.0.s8 %v23
    %v26 = vunpack.c.1.s8 %v23
    %v27 = vunpack.c.2.s8 %v23
    %v28 = vunpack.c.3.s8 %v23
    %v29 = vunpack.c.0.s8 %v24
    %v30 = vunpack.c.1.s8 %v24
    %v31 = vunpack.c.2.s8 %v24
    %v32 = vunpack.c.3.s8 %v24
    %v33 = vcvt.s32.f32 %v25
    %v34 = vcvt.s32.f32 %v26
    %v35 = vcvt.s32.f32 %v27
    %v36 = vcvt.s32.f32 %v28
    %v37 = vcvt.s32.f32 %v29
    %v38 = vcvt.s32.f32 %v30
    %v39 = vcvt.s32.f32 %v31
    %v40 = vcvt.s32.f32 %v32
    %vm41 = vcmp.lt.f32.partialorder %v33, 0.0
    %vm42 = vcmp.lt.f32.partialorder %v34, 0.0
    %vm43 = vcmp.lt.f32.partialorder %v35, 0.0
    %vm44 = vcmp.lt.f32.partialorder %v36, 0.0
    %vm45 = vcmp.lt.f32.partialorder %v37, 0.0
    %vm46 = vcmp.lt.f32.partialorder %v38, 0.0
    %vm47 = vcmp.lt.f32.partialorder %v39, 0.0
    %vm48 = vcmp.lt.f32.partialorder %v40, 0.0
    %v49 = vadd.f32 %v33, 256.0
    %v50 = vadd.f32 %v34, 256.0
    %v51 = vadd.f32 %v35, 256.0
    %v52 = vadd.f32 %v36, 256.0
    %v53 = vadd.f32 %v37, 256.0
    %v54 = vadd.f32 %v38, 256.0
    %v55 = vadd.f32 %v39, 256.0
    %v56 = vadd.f32 %v40, 256.0
    %v57 = vsel %vm41, %v49, %v33
    %v58 = vsel %vm42, %v50, %v34
    %v59 = vsel %vm43, %v51, %v35
    %v60 = vsel %vm44, %v52, %v36
    %v61 = vsel %vm45, %v53, %v37
    %v62 = vsel %vm46, %v54, %v38
    %v63 = vsel %vm47, %v55, %v39
    %v64 = vsel %vm48, %v56, %v40
    %v65 = vmul.f32 %v57, 0.003921569
    %v66 = vmul.f32 %v58, 0.003921569
    %v67 = vmul.f32 %v59, 0.003921569
    %v68 = vmul.f32 %v60, 0.003921569
    %v69 = vmul.f32 %v61, 0.003921569
    %v70 = vmul.f32 %v62, 0.003921569
    %v71 = vmul.f32 %v63, 0.003921569
    %v72 = vmul.f32 %v64, 0.003921569
    %v81 = vrot.slane %v65, 3
    %v82 = vrot.slane %v66, 6
    %v83 = vrot.slane %v66, 1
    %v84 = vrot.slane %v67, 4
    %v85 = vrot.slane %v67, 7
    %v86 = vrot.slane %v68, 2
    %v87 = vrot.slane %v68, 5
    %v88 = vrot.slane %v69, 3
    %v89 = vrot.slane %v70, 6
    %v90 = vrot.slane %v70, 1
    %v91 = vrot.slane %v71, 4
    %v92 = vrot.slane %v71, 7
    %v93 = vrot.slane %v72, 2
    %v94 = vrot.slane %v72, 5
    %vm95 = vcmask 1040384
    %v96 = vsel %vm95, %v65, %v81
    %vm97 = vcmask 1042434
    %v98 = vsel %vm97, %v82, %v83
    %vm99 = vcmask 1041408
    %v100 = vsel %vm99, %v96, %v98
    %vm101 = vcmask 1044484
    %v102 = vsel %vm101, %v84, %v85
    %vm103 = vcmask 1046534
    %v104 = vsel %vm103, %v86, %v87
    %vm105 = vcmask 1045508
    %v106 = vsel %vm105, %v102, %v104
    %vm107 = vcmask 1043456
    %v108 = vsel %vm107, %v100, %v106
    %v109 = vsel %vm95, %v69, %v88
    %v110 = vsel %vm97, %v89, %v90
    %v111 = vsel %vm99, %v109, %v110
    %v112 = vsel %vm101, %v91, %v92
    %v113 = vsel %vm103, %v93, %v94
    %v114 = vsel %vm105, %v112, %v113
    %v115 = vsel %vm107, %v111, %v114
    %118 = vst [vmem:[#allocation5] sm:$0xff] %v108
    %119 = vst [vmem:[#allocation5 + $0x8] sm:$0xff] %v115
    // Predicated region
    $region10: #{tpu_custom_call.1} parent=1 // pred_check
      _
    $region11: #{tpu_custom_call.1} parent=1 // pred_check_branch
      %121 = sbr.rel (0) target = $region13
    $region12: #{tpu_custom_call.1} parent=1 // pred_region
      %123 = vsyncadd [#allocation4], 0
      %s125 = sshll.u32 [#allocation5], 4
      %s126 = int_to_ptr.vmem [resolvable:$true] %s125
      %s127 = sshll.u32 %s1, 4
      %s128 = int_to_ptr.hbm [resolvable:$true] %s127
      %130 = dma.vmem_to_hbm [thread:$0]  %s126, 256, %s128, [#allocation4]
    $region13: #{tpu_custom_call.1} parent=1 // pred_fallthru
      _
    // Predicated region
    $region14: #{tpu_custom_call.1} parent=1 // pred_check
      _
    $region15: #{tpu_custom_call.1} parent=1 // pred_check_branch
      %132 = sbr.rel (0) target = $region17
    $region16: #{tpu_custom_call.1} parent=1 // pred_region
      %134 = dma.done [#allocation4], 256
    $region17: #{tpu_custom_call.1} parent=1 // pred_fallthru
      _
    %135 = vsyncpa [#allocation3], 1
    %136 = vsyncpa [#allocation4], 1

</llo_original>
